<compile_context>
chip_gen: v7x
topology: tpu7x:2x2x1
jax: 0.10.0
libtpu: 0.0.40
codegen_flags: <defaults>
</compile_context>

<pallas_src>
import functools

import jax
import jax.numpy as jnp
from jax.experimental import pallas as pl
from jax.experimental.pallas import tpu as pltpu


def _moving_avg_kernel(x_ref, hf_ref, hb_ref, o_ref, fwin_ref, bwin_ref, *,
                       kernel_size):
    """Main path (TL >= 2*pad).

    x_ref : (TL, C) input tile            o_ref : (TL, C) output tile
    hf_ref: (pad, C) replicate-clamped rows just before the tile
    hb_ref: (pad, C) replicate-clamped rows just after the tile
    fwin_ref / bwin_ref: (3*pad, C) f32 scratch for the boundary windows.
    """
    TL, _ = x_ref.shape
    k = kernel_size
    pad = (k - 1) // 2
    inv_k = 1.0 / k

    # ---- Interior rows [pad, TL - pad): windows lie entirely inside the tile.
    # k shifted slice loads straight from the input tile, f32 accumulation,
    # single store (no padded scratch, no doubled store path).
    Li = TL - 2 * pad
    if Li > 0:
        acc = x_ref[pl.ds(0, Li), :].astype(jnp.float32)
        for d in range(1, k):
            acc = acc + x_ref[pl.ds(d, Li), :].astype(jnp.float32)
        o_ref[pl.ds(pad, Li), :] = (acc * inv_k).astype(o_ref.dtype)

    # ---- Front boundary rows [0, pad): need halo_front + first 2*pad rows.
    fwin_ref[pl.ds(0, pad), :] = hf_ref[...].astype(jnp.float32)
    fwin_ref[pl.ds(pad, 2 * pad), :] = x_ref[pl.ds(0, 2 * pad), :].astype(jnp.float32)
    accf = fwin_ref[pl.ds(0, pad), :]
    for d in range(1, k):
        accf = accf + fwin_ref[pl.ds(d, pad), :]
    o_ref[pl.ds(0, pad), :] = (accf * inv_k).astype(o_ref.dtype)

    # ---- Back boundary rows [TL - pad, TL): last 2*pad rows + halo_back.
    bwin_ref[pl.ds(0, 2 * pad), :] = x_ref[pl.ds(TL - 2 * pad, 2 * pad), :].astype(jnp.float32)
    bwin_ref[pl.ds(2 * pad, pad), :] = hb_ref[...].astype(jnp.float32)
    accb = bwin_ref[pl.ds(0, pad), :]
    for d in range(1, k):
        accb = accb + bwin_ref[pl.ds(d, pad), :]
    o_ref[pl.ds(TL - pad, pad), :] = (accb * inv_k).astype(o_ref.dtype)


def _moving_avg_kernel_small(x_ref, hf_ref, hb_ref, o_ref, win_ref, *,
                             kernel_size):
    """Degenerate path (TL = L < 2*pad): build the full padded window in a
    small VMEM scratch (everything is tiny in this regime)."""
    TL, _ = x_ref.shape
    k = kernel_size
    pad = (k - 1) // 2
    inv_k = 1.0 / k

    win_ref[pl.ds(0, pad), :] = hf_ref[...].astype(jnp.float32)
    win_ref[pl.ds(pad, TL), :] = x_ref[...].astype(jnp.float32)
    win_ref[pl.ds(pad + TL, pad), :] = hb_ref[...].astype(jnp.float32)
    acc = win_ref[pl.ds(0, TL), :]
    for d in range(1, k):
        acc = acc + win_ref[pl.ds(d, TL), :]
    o_ref[...] = (acc * inv_k).astype(o_ref.dtype)


def _vmem_capacity_bytes():
    """Physical VMEM per TensorCore; conservative fallback if unqueryable."""
    try:
        info = pltpu.get_tpu_info()
        cap = getattr(info, "vmem_capacity_bytes", None)
        if cap:
            return int(cap)
    except Exception:
        pass
    return 64 * 1024 * 1024  # v7x per-core size: safe lower bound everywhere


def _pick_l_tile(L, C, itemsize, pad, vmem_cap):
    """Largest L tile whose *full* working set (2x double-buffered input +
    2x double-buffered output tiles + f32 temporaries) fits a generation-aware
    budget, preferring several grid steps over one huge tile."""
    # bytes per L-row: 4 buffered tiles in input dtype + ~3 f32 temp rows
    per_row = C * (4 * itemsize + 3 * 4)
    budget = (12 if vmem_cap <= 64 * 1024 * 1024 else 20) * 1024 * 1024
    cap_tl = max(budget // per_row, 8)
    cap_tl = min(cap_tl, 2048)  # more grid steps -> pipeline overlap / 2 TCs
    if L <= cap_tl:
        return L
    lo = max(2 * pad, 8)
    t = (cap_tl // 8) * 8
    while t >= lo:
        if L % t == 0:          # divisor of L, multiple of 8 -> clean blocking
            return t
        t -= 8
    return L                    # no clean divisor: whole-L tile (limit raised)


def moving_avg(x, kernel_size, stride=1, *, l_tile=None):
    """Pallas TPU equivalent of DSAmamba.moving_avg.forward for (B, H, W, C)."""
    if stride != 1:
        raise NotImplementedError(
            "moving_avg: only stride=1 keeps the sequence length (and the "
            "(B, H, W, C) reshape) valid, matching how the module is used.")
    if kernel_size < 1:
        raise ValueError("moving_avg: kernel_size must be >= 1.")
    if kernel_size == 1:
        return x  # window of 1 is the identity
    if kernel_size % 2 != 1:
        raise ValueError(
            "moving_avg: kernel_size must be odd so the replicate-padded "
            "AvgPool1d output has length H*W (required by the final view).")

    B, H, W, C = x.shape
    L = H * W
    pad = (kernel_size - 1) // 2
    itemsize = jnp.dtype(x.dtype).itemsize
    x_flat = x.reshape(B, L, C)  # contiguous view; no extra HBM traffic

    cap = _vmem_capacity_bytes()
    if l_tile is not None:
        if L % l_tile != 0 or not (l_tile % 8 == 0 or l_tile == L):
            raise ValueError("l_tile must divide L and be a multiple of 8 (or L).")
        TL = l_tile
    else:
        TL = _pick_l_tile(L, C, itemsize, pad, cap)
    nL = L // TL

    # Tiny halo side-inputs: the pad rows just before / after every L tile,
    # replicate-clamped at the sequence ends (this is the only place the
    # replicate padding is ever materialized, and it is O(pad) rows per tile).
    starts = jnp.arange(nL, dtype=jnp.int32) * TL
    off = jnp.arange(pad, dtype=jnp.int32)
    front_idx = jnp.clip(starts[:, None] - pad + off[None, :], 0, L - 1)
    back_idx = jnp.clip(starts[:, None] + TL + off[None, :], 0, L - 1)
    halo_front = jnp.take(x_flat, front_idx, axis=1)  # (B, nL, pad, C)
    halo_back = jnp.take(x_flat, back_idx, axis=1)    # (B, nL, pad, C)

    if TL >= 2 * pad:
        kern = functools.partial(_moving_avg_kernel, kernel_size=kernel_size)
        scratch = [pltpu.VMEM((3 * pad, C), jnp.float32),
                   pltpu.VMEM((3 * pad, C), jnp.float32)]
        scratch_bytes = 2 * 3 * pad * C * 4
    else:  # only reachable when TL == L and L < 2*pad (tiny problem)
        kern = functools.partial(_moving_avg_kernel_small, kernel_size=kernel_size)
        scratch = [pltpu.VMEM((TL + 2 * pad, C), jnp.float32)]
        scratch_bytes = (TL + 2 * pad) * C * 4

    # VMEM accounting: double-buffered input + output tiles and halos, f32
    # temporaries, boundary scratch; raise the scoped limit accordingly.
    tile_bytes = TL * C * itemsize
    halo_bytes = pad * C * itemsize
    working = (4 * tile_bytes + 4 * halo_bytes + 3 * TL * C * 4 + scratch_bytes)
    vmem_limit = int(min(max(working + (8 << 20), 32 << 20), int(cap * 0.9)))

    out = pl.pallas_call(
        kern,
        out_shape=jax.ShapeDtypeStruct((B, L, C), x.dtype),
        grid_spec=pltpu.PrefetchScalarGridSpec(
            num_scalar_prefetch=0,
            grid=(B, nL),
            in_specs=[
                pl.BlockSpec((None, TL, C), lambda b, l: (b, l, 0)),
                pl.BlockSpec((None, None, pad, C), lambda b, l: (b, l, 0, 0)),
                pl.BlockSpec((None, None, pad, C), lambda b, l: (b, l, 0, 0)),
            ],
            out_specs=pl.BlockSpec((None, TL, C), lambda b, l: (b, l, 0)),
            scratch_shapes=scratch,
        ),
        compiler_params=pltpu.CompilerParams(
            dimension_semantics=("parallel", "parallel"),
            vmem_limit_bytes=vmem_limit,
        ),
    )(x_flat, halo_front, halo_back)
    return out.reshape(B, H, W, C)


def _reference_moving_avg(x, kernel_size):
    """Pure-JAX reference mirroring the PyTorch module (replicate pad + AvgPool1d)."""
    B, H, W, C = x.shape
    L = H * W
    pad = (kernel_size - 1) // 2
    xf = x.reshape(B, L, C)
    front = jnp.repeat(xf[:, :1, :], pad, axis=1)
    end = jnp.repeat(xf[:, -1:, :], pad, axis=1)
    xp = jnp.concatenate([front, xf, end], axis=1)
    windows = jnp.stack([xp[:, d:d + L, :] for d in range(kernel_size)], axis=0)
    return jnp.mean(windows, axis=0).reshape(B, H, W, C)


if __name__ == "__main__":
    # Case 1: module-typical small shape (single L tile per batch).
    key = jax.random.PRNGKey(0)
    B, H, W, C = 2, 16, 16, 4
    kernel_size = 5
    x = jax.random.normal(key, (B, H, W, C), dtype=jnp.float32)
    out = jax.block_until_ready(moving_avg(x, kernel_size, stride=1))
    assert out.shape == (B, H, W, C)
    ref = _reference_moving_avg(x, kernel_size)
    err1 = float(jnp.max(jnp.abs(out - ref)))

    # Case 2: exercise the L-tiled + halo path (4 tiles per batch, k=7).
    B2, H2, W2, C2 = 2, 8, 16, 4
    k2 = 7
    x2 = jax.random.normal(jax.random.PRNGKey(0), (B2, H2, W2, C2),
                           dtype=jnp.float32)
    out2 = jax.block_until_ready(moving_avg(x2, k2, stride=1, l_tile=32))
    ref2 = _reference_moving_avg(x2, k2)
    err2 = float(jnp.max(jnp.abs(out2 - ref2)))

    if err1 > 1e-5 or err2 > 1e-5:
        raise AssertionError(
            f"moving_avg mismatch vs reference: err1={err1}, err2={err2}")
    print("KERNEL_OK")
</pallas_src>

<mosaic_0001>
module attributes {stable_mosaic.version = 11 : i64} {
  func.func @_moving_avg_kernel(%arg0: i32, %arg1: i32, %arg2: memref<1x256x4xf32, #tpu.memory_space<vmem>>, %arg3: memref<1x1x2x4xf32, #tpu.memory_space<vmem>>, %arg4: memref<1x1x2x4xf32, #tpu.memory_space<vmem>>, %arg5: memref<1x256x4xf32, #tpu.memory_space<vmem>>, %arg6: memref<6x4xf32, #tpu.memory_space<vmem>>, %arg7: memref<6x4xf32, #tpu.memory_space<vmem>>) attributes {dimension_semantics = [#tpu.dimension_semantics<parallel>, #tpu.dimension_semantics<parallel>], iteration_bounds = array<i64: 2, 1>, scalar_prefetch = 0 : i64, scratch_operands = 2 : i64, tpu.core_type = #tpu.core_type<tc>, window_params = [{transform_indices = @transform_0, window_bounds = array<i64: 1, 256, 4>}, {transform_indices = @transform_1, window_bounds = array<i64: 1, 1, 2, 4>}, {transform_indices = @transform_2, window_bounds = array<i64: 1, 1, 2, 4>}, {transform_indices = @transform_3, window_bounds = array<i64: 1, 256, 4>}]} {
    %c0 = arith.constant 0 : index
    %c0_0 = arith.constant 0 : index
    %c0_1 = arith.constant 0 : index
    %0 = vector.load %arg2[%c0, %c0_0, %c0_1] : memref<1x256x4xf32, #tpu.memory_space<vmem>>, vector<1x252x4xf32>
    %1 = vector.shape_cast %0 : vector<1x252x4xf32> to vector<252x4xf32>
    %c0_2 = arith.constant 0 : index
    %c1 = arith.constant 1 : index
    %c0_3 = arith.constant 0 : index
    %2 = vector.load %arg2[%c0_2, %c1, %c0_3] : memref<1x256x4xf32, #tpu.memory_space<vmem>>, vector<1x252x4xf32>
    %3 = vector.shape_cast %2 : vector<1x252x4xf32> to vector<252x4xf32>
    %4 = arith.addf %1, %3 : vector<252x4xf32>
    %c0_4 = arith.constant 0 : index
    %c2 = arith.constant 2 : index
    %c0_5 = arith.constant 0 : index
    %5 = vector.load %arg2[%c0_4, %c2, %c0_5] : memref<1x256x4xf32, #tpu.memory_space<vmem>>, vector<1x252x4xf32>
    %6 = vector.shape_cast %5 : vector<1x252x4xf32> to vector<252x4xf32>
    %7 = arith.addf %4, %6 : vector<252x4xf32>
    %c0_6 = arith.constant 0 : index
    %c3 = arith.constant 3 : index
    %c0_7 = arith.constant 0 : index
    %8 = vector.load %arg2[%c0_6, %c3, %c0_7] : memref<1x256x4xf32, #tpu.memory_space<vmem>>, vector<1x252x4xf32>
    %9 = vector.shape_cast %8 : vector<1x252x4xf32> to vector<252x4xf32>
    %10 = arith.addf %7, %9 : vector<252x4xf32>
    %c0_8 = arith.constant 0 : index
    %c4 = arith.constant 4 : index
    %c0_9 = arith.constant 0 : index
    %11 = vector.load %arg2[%c0_8, %c4, %c0_9] : memref<1x256x4xf32, #tpu.memory_space<vmem>>, vector<1x252x4xf32>
    %12 = vector.shape_cast %11 : vector<1x252x4xf32> to vector<252x4xf32>
    %13 = arith.addf %10, %12 : vector<252x4xf32>
    %cst = arith.constant 2.000000e-01 : f32
    %14 = vector.broadcast %cst : f32 to vector<252x4xf32>
    %15 = arith.mulf %13, %14 : vector<252x4xf32>
    %c0_10 = arith.constant 0 : index
    %c2_11 = arith.constant 2 : index
    %c0_12 = arith.constant 0 : index
    %16 = vector.load %arg5[%c0_10, %c2_11, %c0_12] : memref<1x256x4xf32, #tpu.memory_space<vmem>>, vector<1x252x4xf32>
    %17 = vector.shape_cast %16 : vector<1x252x4xf32> to vector<252x4xf32>
    %18 = vector.shape_cast %15 : vector<252x4xf32> to vector<1x252x4xf32>
    tpu.vector_store %arg5[%c0_10, %c2_11, %c0_12], %18 {strides = array<i32>} : memref<1x256x4xf32, #tpu.memory_space<vmem>>, vector<1x252x4xf32>,
    %c0_13 = arith.constant 0 : index
    %c0_14 = arith.constant 0 : index
    %c0_15 = arith.constant 0 : index
    %c0_16 = arith.constant 0 : index
    %19 = vector.load %arg3[%c0_13, %c0_14, %c0_15, %c0_16] : memref<1x1x2x4xf32, #tpu.memory_space<vmem>>, vector<1x1x2x4xf32>
    %20 = vector.shape_cast %19 : vector<1x1x2x4xf32> to vector<2x4xf32>
    %c0_17 = arith.constant 0 : index
    %c0_18 = arith.constant 0 : index
    %21 = vector.load %arg6[%c0_17, %c0_18] : memref<6x4xf32, #tpu.memory_space<vmem>>, vector<2x4xf32>
    tpu.vector_store %arg6[%c0_17, %c0_18], %20 {strides = array<i32>} : memref<6x4xf32, #tpu.memory_space<vmem>>, vector<2x4xf32>,
    %c0_19 = arith.constant 0 : index
    %c0_20 = arith.constant 0 : index
    %c0_21 = arith.constant 0 : index
    %22 = vector.load %arg2[%c0_19, %c0_20, %c0_21] : memref<1x256x4xf32, #tpu.memory_space<vmem>>, vector<1x4x4xf32>
    %23 = vector.shape_cast %22 : vector<1x4x4xf32> to vector<4x4xf32>
    %c2_22 = arith.constant 2 : index
    %c0_23 = arith.constant 0 : index
    %24 = vector.load %arg6[%c2_22, %c0_23] : memref<6x4xf32, #tpu.memory_space<vmem>>, vector<4x4xf32>
    tpu.vector_store %arg6[%c2_22, %c0_23], %23 {strides = array<i32>} : memref<6x4xf32, #tpu.memory_space<vmem>>, vector<4x4xf32>,
    %c0_24 = arith.constant 0 : index
    %c0_25 = arith.constant 0 : index
    %25 = vector.load %arg6[%c0_24, %c0_25] : memref<6x4xf32, #tpu.memory_space<vmem>>, vector<2x4xf32>
    %c1_26 = arith.constant 1 : index
    %c0_27 = arith.constant 0 : index
    %26 = vector.load %arg6[%c1_26, %c0_27] : memref<6x4xf32, #tpu.memory_space<vmem>>, vector<2x4xf32>
    %27 = arith.addf %25, %26 : vector<2x4xf32>
    %c2_28 = arith.constant 2 : index
    %c0_29 = arith.constant 0 : index
    %28 = vector.load %arg6[%c2_28, %c0_29] : memref<6x4xf32, #tpu.memory_space<vmem>>, vector<2x4xf32>
    %29 = arith.addf %27, %28 : vector<2x4xf32>
    %c3_30 = arith.constant 3 : index
    %c0_31 = arith.constant 0 : index
    %30 = vector.load %arg6[%c3_30, %c0_31] : memref<6x4xf32, #tpu.memory_space<vmem>>, vector<2x4xf32>
    %31 = arith.addf %29, %30 : vector<2x4xf32>
    %c4_32 = arith.constant 4 : index
    %c0_33 = arith.constant 0 : index
    %32 = vector.load %arg6[%c4_32, %c0_33] : memref<6x4xf32, #tpu.memory_space<vmem>>, vector<2x4xf32>
    %33 = arith.addf %31, %32 : vector<2x4xf32>
    %cst_34 = arith.constant 2.000000e-01 : f32
    %34 = vector.broadcast %cst_34 : f32 to vector<2x4xf32>
    %35 = arith.mulf %33, %34 : vector<2x4xf32>
    %c0_35 = arith.constant 0 : index
    %c0_36 = arith.constant 0 : index
    %c0_37 = arith.constant 0 : index
    %36 = vector.load %arg5[%c0_35, %c0_36, %c0_37] : memref<1x256x4xf32, #tpu.memory_space<vmem>>, vector<1x2x4xf32>
    %37 = vector.shape_cast %36 : vector<1x2x4xf32> to vector<2x4xf32>
    %38 = vector.shape_cast %35 : vector<2x4xf32> to vector<1x2x4xf32>
    tpu.vector_store %arg5[%c0_35, %c0_36, %c0_37], %38 {strides = array<i32>} : memref<1x256x4xf32, #tpu.memory_space<vmem>>, vector<1x2x4xf32>,
    %c0_38 = arith.constant 0 : index
    %c252 = arith.constant 252 : index
    %c0_39 = arith.constant 0 : index
    %39 = vector.load %arg2[%c0_38, %c252, %c0_39] : memref<1x256x4xf32, #tpu.memory_space<vmem>>, vector<1x4x4xf32>
    %40 = vector.shape_cast %39 : vector<1x4x4xf32> to vector<4x4xf32>
    %c0_40 = arith.constant 0 : index
    %c0_41 = arith.constant 0 : index
    %41 = vector.load %arg7[%c0_40, %c0_41] : memref<6x4xf32, #tpu.memory_space<vmem>>, vector<4x4xf32>
    tpu.vector_store %arg7[%c0_40, %c0_41], %40 {strides = array<i32>} : memref<6x4xf32, #tpu.memory_space<vmem>>, vector<4x4xf32>,
    %c0_42 = arith.constant 0 : index
    %c0_43 = arith.constant 0 : index
    %c0_44 = arith.constant 0 : index
    %c0_45 = arith.constant 0 : index
    %42 = vector.load %arg4[%c0_42, %c0_43, %c0_44, %c0_45] : memref<1x1x2x4xf32, #tpu.memory_space<vmem>>, vector<1x1x2x4xf32>
    %43 = vector.shape_cast %42 : vector<1x1x2x4xf32> to vector<2x4xf32>
    %c4_46 = arith.constant 4 : index
    %c0_47 = arith.constant 0 : index
    %44 = vector.load %arg7[%c4_46, %c0_47] : memref<6x4xf32, #tpu.memory_space<vmem>>, vector<2x4xf32>
    tpu.vector_store %arg7[%c4_46, %c0_47], %43 {strides = array<i32>} : memref<6x4xf32, #tpu.memory_space<vmem>>, vector<2x4xf32>,
    %c0_48 = arith.constant 0 : index
    %c0_49 = arith.constant 0 : index
    %45 = vector.load %arg7[%c0_48, %c0_49] : memref<6x4xf32, #tpu.memory_space<vmem>>, vector<2x4xf32>
    %c1_50 = arith.constant 1 : index
    %c0_51 = arith.constant 0 : index
    %46 = vector.load %arg7[%c1_50, %c0_51] : memref<6x4xf32, #tpu.memory_space<vmem>>, vector<2x4xf32>
    %47 = arith.addf %45, %46 : vector<2x4xf32>
    %c2_52 = arith.constant 2 : index
    %c0_53 = arith.constant 0 : index
    %48 = vector.load %arg7[%c2_52, %c0_53] : memref<6x4xf32, #tpu.memory_space<vmem>>, vector<2x4xf32>
    %49 = arith.addf %47, %48 : vector<2x4xf32>
    %c3_54 = arith.constant 3 : index
    %c0_55 = arith.constant 0 : index
    %50 = vector.load %arg7[%c3_54, %c0_55] : memref<6x4xf32, #tpu.memory_space<vmem>>, vector<2x4xf32>
    %51 = arith.addf %49, %50 : vector<2x4xf32>
    %c4_56 = arith.constant 4 : index
    %c0_57 = arith.constant 0 : index
    %52 = vector.load %arg7[%c4_56, %c0_57] : memref<6x4xf32, #tpu.memory_space<vmem>>, vector<2x4xf32>
    %53 = arith.addf %51, %52 : vector<2x4xf32>
    %cst_58 = arith.constant 2.000000e-01 : f32
    %54 = vector.broadcast %cst_58 : f32 to vector<2x4xf32>
    %55 = arith.mulf %53, %54 : vector<2x4xf32>
    %c0_59 = arith.constant 0 : index
    %c254 = arith.constant 254 : index
    %c0_60 = arith.constant 0 : index
    %56 = vector.load %arg5[%c0_59, %c254, %c0_60] : memref<1x256x4xf32, #tpu.memory_space<vmem>>, vector<1x2x4xf32>
    %57 = vector.shape_cast %56 : vector<1x2x4xf32> to vector<2x4xf32>
    %58 = vector.shape_cast %55 : vector<2x4xf32> to vector<1x2x4xf32>
    tpu.vector_store %arg5[%c0_59, %c254, %c0_60], %58 {strides = array<i32>} : memref<1x256x4xf32, #tpu.memory_space<vmem>>, vector<1x2x4xf32>,
    return
  }
  func.func @transform_0(%arg0: i32, %arg1: i32) -> (i32, i32, i32) {
    %c0_i32 = arith.constant 0 : i32
    %c0_i32_0 = arith.constant 0 : i32
    return %arg0, %arg1, %c0_i32 : i32, i32, i32
  }
  func.func @transform_1(%arg0: i32, %arg1: i32) -> (i32, i32, i32, i32) {
    %c0_i32 = arith.constant 0 : i32
    %c0_i32_0 = arith.constant 0 : i32
    %c0_i32_1 = arith.constant 0 : i32
    return %arg0, %arg1, %c0_i32, %c0_i32_0 : i32, i32, i32, i32
  }
  func.func @transform_2(%arg0: i32, %arg1: i32) -> (i32, i32, i32, i32) {
    %c0_i32 = arith.constant 0 : i32
    %c0_i32_0 = arith.constant 0 : i32
    %c0_i32_1 = arith.constant 0 : i32
    return %arg0, %arg1, %c0_i32, %c0_i32_0 : i32, i32, i32, i32
  }
  func.func @transform_3(%arg0: i32, %arg1: i32) -> (i32, i32, i32) {
    %c0_i32 = arith.constant 0 : i32
    %c0_i32_0 = arith.constant 0 : i32
    return %arg0, %arg1, %c0_i32 : i32, i32, i32
  }
}

</mosaic_0001>

<llo_original>
// kernel: tpu_custom_call.1
$region0: #{tpu_custom_call.1}
  #allocation0 [shape = 'u32[]', space=smem, size = 0x4, offset = 0x4, fixed_abs, tag = 'smem constant byte address 0x4 - core index']
  #allocation1 [shape = 'u32[144,128]{1,0:T(1,128)}', space=vmem, size = 0x12000, scoped, tag = 'internal scratch']
  #allocation2 [shape = 'f32[6,4]{1,0:T(8,128)}', space=vmem, size = 0x1000, scoped, tag = 'scratch operand']
  #allocation3 [shape = 'f32[6,4]{1,0:T(8,128)}', space=vmem, size = 0x1000, scoped, tag = 'scratch operand']
  %s0 = inlined_call_operand.vmem [shape: f32[2,256,4], index: 0, kind: input, shape index: {}]
  %s1 = inlined_call_operand.vmem [shape: f32[2,1,2,4], index: 1, kind: input, shape index: {}]
  %s2 = inlined_call_operand.vmem [shape: f32[2,1,2,4], index: 2, kind: input, shape index: {}]
  %s3 = inlined_call_operand.vmem [shape: f32[2,256,4], index: 3, kind: output, shape index: {}]
  %s4 = sld [smem:[#allocation0]]
  $region45: #{tpu_custom_call.1} parent=0
    _
  %s6 = ssub.s32 1, %s4
  %s7 = scalar_select 0, %s6, %s4
  loop: start=0, step=1, limit=4
  $region2: #{tpu_custom_call.1} parent=0 // loop_pre_header
    _
  $region3: #{tpu_custom_call.1} parent=0 // loop_header
    %s9 = sphi 0, %s13
    %p10 = scmp.ge.s32.totalorder %s9, 4
    %s16 = sphi 0, %s28
    %s17 = sphi 0, %s24
    %s18 = sphi 0, %s16
    %s19 = sphi 0, %s17
    %s20 = sphi 0, %s18
    %s21 = sphi 0, %s19
    %s33 = sphi 0, %s35
    %s36 = sphi 0, %s33
    %s37 = sphi 0, %s36
    %s53 = sphi 0, %s37
    %s61 = sphi 0, %s63
    %s64 = sphi 0, %s61
    %s65 = sphi 0, %s64
    %s81 = sphi 0, %s65
    %s89 = sphi 0, %s91
    %s92 = sphi 0, %s89
    %s93 = sphi 0, %s92
    %s109 = sphi 0, %s93
    %s117 = sphi 0, %s119
    %s120 = sphi 0, %s117
    %s121 = sphi 0, %s120
    %s137 = sphi 0, %s121
  $region4: #{tpu_custom_call.1} parent=0 // loop_header_branch
    %12 = sbr.rel (%p10) target = $region8
  $region5: #{tpu_custom_call.1} parent=0 // loop_body
    %s14 = ssub.s32 %s9, 1
    %s15 = ssub.s32 %s9, 2
    %s22 = sadd.s32 1, %s17
    %p23 = scmp.ge.s32.totalorder %s22, 1
    %s24 = scalar_select %p23, 0, %s22
    %s25 = sadd.s32 1, %s16
    %s26 = scalar_select %p23, %s25, %s16
    %p27 = scmp.ge.s32.totalorder %s26, 2
    %s28 = scalar_select %p27, 0, %s26
    %s29 = ssub.s32 %s16, %s28
    %s30 = ssub.s32 %s17, %s24
    %s31 = sor.u32 %s29, %s30
    %p32 = scmp.eq.s32.totalorder %s31, 0
    %s34 = sadd.s32 %s33, 1
    %s35 = scalar_select %p32, %s33, %s34
    %p38 = pneg %p32
    %p39 = scmp.eq.s32.totalorder %s9, 1
    %p40 = por %p38, %p39
    %p41 = scmp.ne.s32.totalorder %s33, %s36
    %p42 = scmp.eq.s32.totalorder %s9, 0
    %p43 = por %p41, %p42
    %p44 = scmp.ne.s32.totalorder %s33, %s36
    %p45 = scmp.eq.s32.totalorder %s14, 1
    %p46 = por %p44, %p45
    %p47 = scmp.ne.s32.totalorder %s36, %s37
    %p48 = scmp.eq.s32.totalorder %s14, 0
    %p49 = por %p47, %p48
    %p50 = scmp.ne.s32.totalorder %s36, %s37
    %p51 = scmp.eq.s32.totalorder %s15, 1
    %p52 = por %p50, %p51
    %p54 = scmp.ne.s32.totalorder %s37, %s53
    %p55 = scmp.eq.s32.totalorder %s15, 0
    %p56 = por %p54, %p55
    %s57 = ssub.s32 %s16, %s28
    %s58 = ssub.s32 %s17, %s24
    %s59 = sor.u32 %s57, %s58
    %p60 = scmp.eq.s32.totalorder %s59, 0
    %s62 = sadd.s32 %s61, 1
    %s63 = scalar_select %p60, %s61, %s62
    %p66 = pneg %p60
    %p67 = scmp.eq.s32.totalorder %s9, 1
    %p68 = por %p66, %p67
    %p69 = scmp.ne.s32.totalorder %s61, %s64
    %p70 = scmp.eq.s32.totalorder %s9, 0
    %p71 = por %p69, %p70
    %p72 = scmp.ne.s32.totalorder %s61, %s64
    %p73 = scmp.eq.s32.totalorder %s14, 1
    %p74 = por %p72, %p73
    %p75 = scmp.ne.s32.totalorder %s64, %s65
    %p76 = scmp.eq.s32.totalorder %s14, 0
    %p77 = por %p75, %p76
    %p78 = scmp.ne.s32.totalorder %s64, %s65
    %p79 = scmp.eq.s32.totalorder %s15, 1
    %p80 = por %p78, %p79
    %p82 = scmp.ne.s32.totalorder %s65, %s81
    %p83 = scmp.eq.s32.totalorder %s15, 0
    %p84 = por %p82, %p83
    %s85 = ssub.s32 %s16, %s28
    %s86 = ssub.s32 %s17, %s24
    %s87 = sor.u32 %s85, %s86
    %p88 = scmp.eq.s32.totalorder %s87, 0
    %s90 = sadd.s32 %s89, 1
    %s91 = scalar_select %p88, %s89, %s90
    %p94 = pneg %p88
    %p95 = scmp.eq.s32.totalorder %s9, 1
    %p96 = por %p94, %p95
    %p97 = scmp.ne.s32.totalorder %s89, %s92
    %p98 = scmp.eq.s32.totalorder %s9, 0
    %p99 = por %p97, %p98
    %p100 = scmp.ne.s32.totalorder %s89, %s92
    %p101 = scmp.eq.s32.totalorder %s14, 1
    %p102 = por %p100, %p101
    %p103 = scmp.ne.s32.totalorder %s92, %s93
    %p104 = scmp.eq.s32.totalorder %s14, 0
    %p105 = por %p103, %p104
    %p106 = scmp.ne.s32.totalorder %s92, %s93
    %p107 = scmp.eq.s32.totalorder %s15, 1
    %p108 = por %p106, %p107
    %p110 = scmp.ne.s32.totalorder %s93, %s109
    %p111 = scmp.eq.s32.totalorder %s15, 0
    %p112 = por %p110, %p111
    %s113 = ssub.s32 %s16, %s28
    %s114 = ssub.s32 %s17, %s24
    %s115 = sor.u32 %s113, %s114
    %p116 = scmp.eq.s32.totalorder %s115, 0
    %s118 = sadd.s32 %s117, 1
    %s119 = scalar_select %p116, %s117, %s118
    %p122 = pneg %p116
    %p123 = scmp.eq.s32.totalorder %s9, 1
    %p124 = por %p122, %p123
    %p125 = scmp.ne.s32.totalorder %s117, %s120
    %p126 = scmp.eq.s32.totalorder %s9, 0
    %p127 = por %p125, %p126
    %p128 = scmp.ne.s32.totalorder %s117, %s120
    %p129 = scmp.eq.s32.totalorder %s14, 1
    %p130 = por %p128, %p129
    %p131 = scmp.ne.s32.totalorder %s120, %s121
    %p132 = scmp.eq.s32.totalorder %s14, 0
    %p133 = por %p131, %p132
    %p134 = scmp.ne.s32.totalorder %s120, %s121
    %p135 = scmp.eq.s32.totalorder %s15, 1
    %p136 = por %p134, %p135
    %p138 = scmp.ne.s32.totalorder %s121, %s137
    %p139 = scmp.eq.s32.totalorder %s15, 0
    %p140 = por %p138, %p139
    %p141 = scmp.le.s32.totalorder 1, %s9
    %p142 = scmp.lt.s32.totalorder %s9, 3
    %p143 = pnand %p141, %p142
    %p144 = pneg %p143
    // Predicated region
    $region9: #{tpu_custom_call.1} parent=5 // pred_check
      _
    $region10: #{tpu_custom_call.1} parent=5 // pred_check_branch
      %146 = sbr.rel (%p143) target = $region12
    $region11: #{tpu_custom_call.1} parent=5 // pred_region
      %s147 = ssub.s32 %s9, 1
    $region12: #{tpu_custom_call.1} parent=5 // pred_fallthru
      _
    %p148 = scmp.lt.s32.totalorder %s9, 2
    // Predicated region
    $region13: #{tpu_custom_call.1} parent=5 // pred_check
      %p149 = pneg %p148
    $region14: #{tpu_custom_call.1} parent=5 // pred_check_branch
      %151 = sbr.rel (%p149) target = $region16
    $region15: #{tpu_custom_call.1} parent=5 // pred_region
      // Predicated region
      $region17: #{tpu_custom_call.1} parent=15 // pred_check
        %p152 = pneg %p43
      $region18: #{tpu_custom_call.1} parent=15 // pred_check_branch
        %154 = sbr.rel (%p152) target = $region20
      $region19: #{tpu_custom_call.1} parent=15 // pred_region
        %s155 = smul.u32 32, %s17
        %p156 = scmp.lt.s32.totalorder %s16, 1
        %s157 = scalar_select %p156, %s16, 1
        %p158 = scmp.lt.s32.totalorder %s155, 31
        %s159 = scalar_select %p158, %s155, 31
        %s160 = smul.addr %s157, 32
        %s161 = sadd.s32 %s159, %s160
        %s162 = smul.addr %s161, 8
        %s163 = scalar_lea.vmem %s0, %s162
        %s164 = smul.u32 32, %s17
      $region20: #{tpu_custom_call.1} parent=15 // pred_fallthru
        _
      // Predicated region
      $region21: #{tpu_custom_call.1} parent=15 // pred_check
        %p165 = pneg %p71
      $region22: #{tpu_custom_call.1} parent=15 // pred_check_branch
        %167 = sbr.rel (%p165) target = $region24
      $region23: #{tpu_custom_call.1} parent=15 // pred_region
        %p168 = scmp.lt.s32.totalorder %s16, 1
        %s169 = scalar_select %p168, %s16, 1
        %p170 = scmp.lt.s32.totalorder %s17, 0
        %s171 = scalar_select %p170, %s17, 0
        %s172 = sadd.s32 %s171, %s169
        %s173 = smul.addr %s172, 2
        %s174 = scalar_lea.vmem %s1, %s173
      $region24: #{tpu_custom_call.1} parent=15 // pred_fallthru
        _
      // Predicated region
      $region25: #{tpu_custom_call.1} parent=15 // pred_check
        %p175 = pneg %p99
      $region26: #{tpu_custom_call.1} parent=15 // pred_check_branch
        %177 = sbr.rel (%p175) target = $region28
      $region27: #{tpu_custom_call.1} parent=15 // pred_region
        %p178 = scmp.lt.s32.totalorder %s16, 1
        %s179 = scalar_select %p178, %s16, 1
        %p180 = scmp.lt.s32.totalorder %s17, 0
        %s181 = scalar_select %p180, %s17, 0
        %s182 = sadd.s32 %s181, %s179
        %s183 = smul.addr %s182, 2
        %s184 = scalar_lea.vmem %s2, %s183
      $region28: #{tpu_custom_call.1} parent=15 // pred_fallthru
        _
    $region16: #{tpu_custom_call.1} parent=5 // pred_fallthru
      _
    %p185 = scmp.le.s32.totalorder 1, %s9
    %p186 = scmp.lt.s32.totalorder %s9, 3
    %p187 = pnand %p185, %p186
    %p188 = pneg %p187
    // Predicated region
    $region29: #{tpu_custom_call.1} parent=5 // pred_check
      _
    $region30: #{tpu_custom_call.1} parent=5 // pred_check_branch
      %190 = sbr.rel (%p187) target = $region32
    $region31: #{tpu_custom_call.1} parent=5 // pred_region
      %s191 = ssub.s32 %s9, 1
      %s192 = smul.u32 32, %s19
      %p193 = scmp.lt.s32.totalorder %s18, 1
      %s194 = scalar_select %p193, %s18, 1
      %p195 = scmp.lt.s32.totalorder %s192, 31
      %s196 = scalar_select %p195, %s192, 31
      %s197 = smul.addr %s194, 32
      %s198 = sadd.s32 %s196, %s197
      %s199 = smul.addr %s198, 8
      %s200 = scalar_lea.vmem %s0, %s199
      %p201 = pneg %p49
      %p202 = pneg %p46
      %p203 = scmp.lt.s32.totalorder %s18, 1
      %s204 = scalar_select %p203, %s18, 1
      %p205 = scmp.lt.s32.totalorder %s19, 0
      %s206 = scalar_select %p205, %s19, 0
      %s207 = sadd.s32 %s206, %s204
      %s208 = smul.addr %s207, 2
      %s209 = scalar_lea.vmem %s1, %s208
      %p210 = pneg %p77
      %p211 = pneg %p74
      %p212 = scmp.lt.s32.totalorder %s18, 1
      %s213 = scalar_select %p212, %s18, 1
      %p214 = scmp.lt.s32.totalorder %s19, 0
      %s215 = scalar_select %p214, %s19, 0
      %s216 = sadd.s32 %s215, %s213
      %s217 = smul.addr %s216, 2
      %s218 = scalar_lea.vmem %s2, %s217
      %p219 = pneg %p105
      %p220 = pneg %p102
      %p221 = pneg %p133
      %p222 = pneg %p130
      %s223 = smul.u32 32, %s19
      %p224 = scmp.lt.s32.totalorder %s18, 1
      %s225 = scalar_select %p224, %s18, 1
      %p226 = scmp.lt.s32.totalorder %s223, 31
      %s227 = scalar_select %p226, %s223, 31
      %s228 = smul.addr %s225, 32
      %s229 = sadd.s32 %s227, %s228
      %s230 = smul.addr %s229, 8
      %s231 = scalar_lea.vmem %s3, %s230
      %s232 = smul.u32 32, %s19
      %p233 = scmp.lt.s32.totalorder %s18, 1
      %s234 = scalar_select %p233, %s18, 1
      %p235 = scmp.lt.s32.totalorder %s232, 31
      %s236 = scalar_select %p235, %s232, 31
      %s237 = smul.addr %s234, 32
      %s238 = sadd.s32 %s236, %s237
      %s239 = smul.addr %s238, 8
      %s240 = scalar_lea.vmem %s0, %s239
      %s241 = smul.u32 32, %s19
      %p242 = scmp.lt.s32.totalorder %s18, 1
      %s243 = scalar_select %p242, %s18, 1
      %p244 = scmp.lt.s32.totalorder %s19, 0
      %s245 = scalar_select %p244, %s19, 0
      %s246 = sadd.s32 %s245, %s243
      %s247 = smul.addr %s246, 2
      %s248 = scalar_lea.vmem %s1, %s247
      %p249 = scmp.lt.s32.totalorder %s18, 1
      %s250 = scalar_select %p249, %s18, 1
      %p251 = scmp.lt.s32.totalorder %s19, 0
      %s252 = scalar_select %p251, %s19, 0
      %s253 = sadd.s32 %s252, %s250
      %s254 = smul.addr %s253, 2
      %s255 = scalar_lea.vmem %s2, %s254
      %s256 = smul.u32 32, %s19
      %p257 = scmp.lt.s32.totalorder %s18, 1
      %s258 = scalar_select %p257, %s18, 1
      %p259 = scmp.lt.s32.totalorder %s256, 31
      %s260 = scalar_select %p259, %s256, 31
      %s261 = smul.addr %s258, 32
      %s262 = sadd.s32 %s260, %s261
      %s263 = smul.addr %s262, 8
      %s264 = scalar_lea.vmem %s3, %s263
      %s265 = smul.u32 32, %s19
      %v266 = vld [vmem:[%s240] sm:$0xff]
      %v267 = vld [vmem:[%s240 + $0x8] sm:$0xff]
      %v268 = vld [vmem:[%s240 + $0x10] sm:$0xff]
      %v269 = vld [vmem:[%s240 + $0x18] sm:$0xff]
      %v270 = vld [vmem:[%s240 + $0x20] sm:$0xff]
      %v271 = vld [vmem:[%s240 + $0x28] sm:$0xff]
      %v272 = vld [vmem:[%s240 + $0x30] sm:$0xff]
      %v273 = vld [vmem:[%s240 + $0x38] sm:$0xff]
      %v274 = vld [vmem:[%s240 + $0x40] sm:$0xff]
      %v275 = vld [vmem:[%s240 + $0x48] sm:$0xff]
      %v276 = vld [vmem:[%s240 + $0x50] sm:$0xff]
      %v277 = vld [vmem:[%s240 + $0x58] sm:$0xff]
      %v278 = vld [vmem:[%s240 + $0x60] sm:$0xff]
      %v279 = vld [vmem:[%s240 + $0x68] sm:$0xff]
      %v280 = vld [vmem:[%s240 + $0x70] sm:$0xff]
      %v281 = vld [vmem:[%s240 + $0x78] sm:$0xff]
      %v282 = vld [vmem:[%s240 + $0x80] sm:$0xff]
      %v283 = vld [vmem:[%s240 + $0x88] sm:$0xff]
      %v284 = vld [vmem:[%s240 + $0x90] sm:$0xff]
      %v285 = vld [vmem:[%s240 + $0x98] sm:$0xff]
      %v286 = vld [vmem:[%s240 + $0xa0] sm:$0xff]
      %v287 = vld [vmem:[%s240 + $0xa8] sm:$0xff]
      %v288 = vld [vmem:[%s240 + $0xb0] sm:$0xff]
      %v289 = vld [vmem:[%s240 + $0xb8] sm:$0xff]
      %v290 = vld [vmem:[%s240 + $0xc0] sm:$0xff]
      %v291 = vld [vmem:[%s240 + $0xc8] sm:$0xff]
      %v292 = vld [vmem:[%s240 + $0xd0] sm:$0xff]
      %v293 = vld [vmem:[%s240 + $0xd8] sm:$0xff]
      %v294 = vld [vmem:[%s240 + $0xe0] sm:$0xff]
      %v295 = vld [vmem:[%s240 + $0xe8] sm:$0xff]
      %v296 = vld [vmem:[%s240 + $0xf0] sm:$0xff]
      %v297 = vld [vmem:[%s240 + $0xf8] sm:$0xf]
      %v298 = vld [vmem:[%s240 + $0x1] sm:$0xff]
      %v299 = vld [vmem:[%s240 + $0x9] sm:$0xff]
      %v300 = vld [vmem:[%s240 + $0x11] sm:$0xff]
      %v301 = vld [vmem:[%s240 + $0x19] sm:$0xff]
      %v302 = vld [vmem:[%s240 + $0x21] sm:$0xff]
      %v303 = vld [vmem:[%s240 + $0x29] sm:$0xff]
      %v304 = vld [vmem:[%s240 + $0x31] sm:$0xff]
      %v305 = vld [vmem:[%s240 + $0x39] sm:$0xff]
      %v306 = vld [vmem:[%s240 + $0x41] sm:$0xff]
      %v307 = vld [vmem:[%s240 + $0x49] sm:$0xff]
      %v308 = vld [vmem:[%s240 + $0x51] sm:$0xff]
      %v309 = vld [vmem:[%s240 + $0x59] sm:$0xff]
      %v310 = vld [vmem:[%s240 + $0x61] sm:$0xff]
      %v311 = vld [vmem:[%s240 + $0x69] sm:$0xff]
      %v312 = vld [vmem:[%s240 + $0x71] sm:$0xff]
      %v313 = vld [vmem:[%s240 + $0x79] sm:$0xff]
      %v314 = vld [vmem:[%s240 + $0x81] sm:$0xff]
      %v315 = vld [vmem:[%s240 + $0x89] sm:$0xff]
      %v316 = vld [vmem:[%s240 + $0x91] sm:$0xff]
      %v317 = vld [vmem:[%s240 + $0x99] sm:$0xff]
      %v318 = vld [vmem:[%s240 + $0xa1] sm:$0xff]
      %v319 = vld [vmem:[%s240 + $0xa9] sm:$0xff]
      %v320 = vld [vmem:[%s240 + $0xb1] sm:$0xff]
      %v321 = vld [vmem:[%s240 + $0xb9] sm:$0xff]
      %v322 = vld [vmem:[%s240 + $0xc1] sm:$0xff]
      %v323 = vld [vmem:[%s240 + $0xc9] sm:$0xff]
      %v324 = vld [vmem:[%s240 + $0xd1] sm:$0xff]
      %v325 = vld [vmem:[%s240 + $0xd9] sm:$0xff]
      %v326 = vld [vmem:[%s240 + $0xe1] sm:$0xff]
      %v327 = vld [vmem:[%s240 + $0xe9] sm:$0xff]
      %v328 = vld [vmem:[%s240 + $0xf1] sm:$0xff]
      %v329 = vld [vmem:[%s240 + $0xf9] sm:$0xf]
      %v330 = vadd.f32 %v266, %v298
      %v331 = vadd.f32 %v267, %v299
      %v332 = vadd.f32 %v268, %v300
      %v333 = vadd.f32 %v269, %v301
      %v334 = vadd.f32 %v270, %v302
      %v335 = vadd.f32 %v271, %v303
      %v336 = vadd.f32 %v272, %v304
      %v337 = vadd.f32 %v273, %v305
      %v338 = vadd.f32 %v274, %v306
      %v339 = vadd.f32 %v275, %v307
      %v340 = vadd.f32 %v276, %v308
      %v341 = vadd.f32 %v277, %v309
      %v342 = vadd.f32 %v278, %v310
      %v343 = vadd.f32 %v279, %v311
      %v344 = vadd.f32 %v280, %v312
      %v345 = vadd.f32 %v281, %v313
      %v346 = vadd.f32 %v282, %v314
      %v347 = vadd.f32 %v283, %v315
      %v348 = vadd.f32 %v284, %v316
      %v349 = vadd.f32 %v285, %v317
      %v350 = vadd.f32 %v286, %v318
      %v351 = vadd.f32 %v287, %v319
      %v352 = vadd.f32 %v288, %v320
      %v353 = vadd.f32 %v289, %v321
      %v354 = vadd.f32 %v290, %v322
      %v355 = vadd.f32 %v291, %v323
      %v356 = vadd.f32 %v292, %v324
      %v357 = vadd.f32 %v293, %v325
      %v358 = vadd.f32 %v294, %v326
      %v359 = vadd.f32 %v295, %v327
      %v360 = vadd.f32 %v296, %v328
      %v361 = vadd.f32 %v297, %v329
      %v362 = vld [vmem:[%s240 + $0x2] sm:$0xff]
      %v363 = vld [vmem:[%s240 + $0xa] sm:$0xff]
      %v364 = vld [vmem:[%s240 + $0x12] sm:$0xff]
      %v365 = vld [vmem:[%s240 + $0x1a] sm:$0xff]
      %v366 = vld [vmem:[%s240 + $0x22] sm:$0xff]
      %v367 = vld [vmem:[%s240 + $0x2a] sm:$0xff]
      %v368 = vld [vmem:[%s240 + $0x32] sm:$0xff]
      %v369 = vld [vmem:[%s240 + $0x3a] sm:$0xff]
      %v370 = vld [vmem:[%s240 + $0x42] sm:$0xff]
      %v371 = vld [vmem:[%s240 + $0x4a] sm:$0xff]
      %v372 = vld [vmem:[%s240 + $0x52] sm:$0xff]
      %v373 = vld [vmem:[%s240 + $0x5a] sm:$0xff]
      %v374 = vld [vmem:[%s240 + $0x62] sm:$0xff]
      %v375 = vld [vmem:[%s240 + $0x6a] sm:$0xff]
      %v376 = vld [vmem:[%s240 + $0x72] sm:$0xff]
      %v377 = vld [vmem:[%s240 + $0x7a] sm:$0xff]
      %v378 = vld [vmem:[%s240 + $0x82] sm:$0xff]
      %v379 = vld [vmem:[%s240 + $0x8a] sm:$0xff]
      %v380 = vld [vmem:[%s240 + $0x92] sm:$0xff]
      %v381 = vld [vmem:[%s240 + $0x9a] sm:$0xff]
      %v382 = vld [vmem:[%s240 + $0xa2] sm:$0xff]
      %v383 = vld [vmem:[%s240 + $0xaa] sm:$0xff]
      %v384 = vld [vmem:[%s240 + $0xb2] sm:$0xff]
      %v385 = vld [vmem:[%s240 + $0xba] sm:$0xff]
      %v386 = vld [vmem:[%s240 + $0xc2] sm:$0xff]
      %v387 = vld [vmem:[%s240 + $0xca] sm:$0xff]
      %v388 = vld [vmem:[%s240 + $0xd2] sm:$0xff]
      %v389 = vld [vmem:[%s240 + $0xda] sm:$0xff]
      %v390 = vld [vmem:[%s240 + $0xe2] sm:$0xff]
      %v391 = vld [vmem:[%s240 + $0xea] sm:$0xff]
      %v392 = vld [vmem:[%s240 + $0xf2] sm:$0xff]
      %v393 = vld [vmem:[%s240 + $0xfa] sm:$0xf]
      %v394 = vadd.f32 %v330, %v362
      %v395 = vadd.f32 %v331, %v363
      %v396 = vadd.f32 %v332, %v364
      %v397 = vadd.f32 %v333, %v365
      %v398 = vadd.f32 %v334, %v366
      %v399 = vadd.f32 %v335, %v367
      %v400 = vadd.f32 %v336, %v368
      %v401 = vadd.f32 %v337, %v369
      %v402 = vadd.f32 %v338, %v370
      %v403 = vadd.f32 %v339, %v371
      %v404 = vadd.f32 %v340, %v372
      %v405 = vadd.f32 %v341, %v373
      %v406 = vadd.f32 %v342, %v374
      %v407 = vadd.f32 %v343, %v375
      %v408 = vadd.f32 %v344, %v376
      %v409 = vadd.f32 %v345, %v377
      %v410 = vadd.f32 %v346, %v378
      %v411 = vadd.f32 %v347, %v379
      %v412 = vadd.f32 %v348, %v380
      %v413 = vadd.f32 %v349, %v381
      %v414 = vadd.f32 %v350, %v382
      %v415 = vadd.f32 %v351, %v383
      %v416 = vadd.f32 %v352, %v384
      %v417 = vadd.f32 %v353, %v385
      %v418 = vadd.f32 %v354, %v386
      %v419 = vadd.f32 %v355, %v387
      %v420 = vadd.f32 %v356, %v388
      %v421 = vadd.f32 %v357, %v389
      %v422 = vadd.f32 %v358, %v390
      %v423 = vadd.f32 %v359, %v391
      %v424 = vadd.f32 %v360, %v392
      %v425 = vadd.f32 %v361, %v393
      %v426 = vld [vmem:[%s240 + $0x3] sm:$0xff]
      %v427 = vld [vmem:[%s240 + $0xb] sm:$0xff]
      %v428 = vld [vmem:[%s240 + $0x13] sm:$0xff]
      %v429 = vld [vmem:[%s240 + $0x1b] sm:$0xff]
      %v430 = vld [vmem:[%s240 + $0x23] sm:$0xff]
      %v431 = vld [vmem:[%s240 + $0x2b] sm:$0xff]
      %v432 = vld [vmem:[%s240 + $0x33] sm:$0xff]
      %v433 = vld [vmem:[%s240 + $0x3b] sm:$0xff]
      %v434 = vld [vmem:[%s240 + $0x43] sm:$0xff]
      %v435 = vld [vmem:[%s240 + $0x4b] sm:$0xff]
      %v436 = vld [vmem:[%s240 + $0x53] sm:$0xff]
      %v437 = vld [vmem:[%s240 + $0x5b] sm:$0xff]
      %v438 = vld [vmem:[%s240 + $0x63] sm:$0xff]
      %v439 = vld [vmem:[%s240 + $0x6b] sm:$0xff]
      %v440 = vld [vmem:[%s240 + $0x73] sm:$0xff]
      %v441 = vld [vmem:[%s240 + $0x7b] sm:$0xff]
      %v442 = vld [vmem:[%s240 + $0x83] sm:$0xff]
      %v443 = vld [vmem:[%s240 + $0x8b] sm:$0xff]
      %v444 = vld [vmem:[%s240 + $0x93] sm:$0xff]
      %v445 = vld [vmem:[%s240 + $0x9b] sm:$0xff]
      %v446 = vld [vmem:[%s240 + $0xa3] sm:$0xff]
      %v447 = vld [vmem:[%s240 + $0xab] sm:$0xff]
      %v448 = vld [vmem:[%s240 + $0xb3] sm:$0xff]
      %v449 = vld [vmem:[%s240 + $0xbb] sm:$0xff]
      %v450 = vld [vmem:[%s240 + $0xc3] sm:$0xff]
      %v451 = vld [vmem:[%s240 + $0xcb] sm:$0xff]
      %v452 = vld [vmem:[%s240 + $0xd3] sm:$0xff]
      %v453 = vld [vmem:[%s240 + $0xdb] sm:$0xff]
      %v454 = vld [vmem:[%s240 + $0xe3] sm:$0xff]
      %v455 = vld [vmem:[%s240 + $0xeb] sm:$0xff]
      %v456 = vld [vmem:[%s240 + $0xf3] sm:$0xff]
      %v457 = vld [vmem:[%s240 + $0xfb] sm:$0xf]
      %v458 = vadd.f32 %v394, %v426
      %v459 = vadd.f32 %v395, %v427
      %v460 = vadd.f32 %v396, %v428
      %v461 = vadd.f32 %v397, %v429
      %v462 = vadd.f32 %v398, %v430
      %v463 = vadd.f32 %v399, %v431
      %v464 = vadd.f32 %v400, %v432
      %v465 = vadd.f32 %v401, %v433
      %v466 = vadd.f32 %v402, %v434
      %v467 = vadd.f32 %v403, %v435
      %v468 = vadd.f32 %v404, %v436
      %v469 = vadd.f32 %v405, %v437
      %v470 = vadd.f32 %v406, %v438
      %v471 = vadd.f32 %v407, %v439
      %v472 = vadd.f32 %v408, %v440
      %v473 = vadd.f32 %v409, %v441
      %v474 = vadd.f32 %v410, %v442
      %v475 = vadd.f32 %v411, %v443
      %v476 = vadd.f32 %v412, %v444
      %v477 = vadd.f32 %v413, %v445
      %v478 = vadd.f32 %v414, %v446
      %v479 = vadd.f32 %v415, %v447
      %v480 = vadd.f32 %v416, %v448
      %v481 = vadd.f32 %v417, %v449
      %v482 = vadd.f32 %v418, %v450
      %v483 = vadd.f32 %v419, %v451
      %v484 = vadd.f32 %v420, %v452
      %v485 = vadd.f32 %v421, %v453
      %v486 = vadd.f32 %v422, %v454
      %v487 = vadd.f32 %v423, %v455
      %v488 = vadd.f32 %v424, %v456
      %v489 = vadd.f32 %v425, %v457
      %v490 = vld [vmem:[%s240 + $0x4] sm:$0xff]
      %v491 = vld [vmem:[%s240 + $0xc] sm:$0xff]
      %v492 = vld [vmem:[%s240 + $0x14] sm:$0xff]
      %v493 = vld [vmem:[%s240 + $0x1c] sm:$0xff]
      %v494 = vld [vmem:[%s240 + $0x24] sm:$0xff]
      %v495 = vld [vmem:[%s240 + $0x2c] sm:$0xff]
      %v496 = vld [vmem:[%s240 + $0x34] sm:$0xff]
      %v497 = vld [vmem:[%s240 + $0x3c] sm:$0xff]
      %v498 = vld [vmem:[%s240 + $0x44] sm:$0xff]
      %v499 = vld [vmem:[%s240 + $0x4c] sm:$0xff]
      %v500 = vld [vmem:[%s240 + $0x54] sm:$0xff]
      %v501 = vld [vmem:[%s240 + $0x5c] sm:$0xff]
      %v502 = vld [vmem:[%s240 + $0x64] sm:$0xff]
      %v503 = vld [vmem:[%s240 + $0x6c] sm:$0xff]
      %v504 = vld [vmem:[%s240 + $0x74] sm:$0xff]
      %v505 = vld [vmem:[%s240 + $0x7c] sm:$0xff]
      %v506 = vld [vmem:[%s240 + $0x84] sm:$0xff]
      %v507 = vld [vmem:[%s240 + $0x8c] sm:$0xff]
      %v508 = vld [vmem:[%s240 + $0x94] sm:$0xff]
      %v509 = vld [vmem:[%s240 + $0x9c] sm:$0xff]
      %v510 = vld [vmem:[%s240 + $0xa4] sm:$0xff]
      %v511 = vld [vmem:[%s240 + $0xac] sm:$0xff]
      %v512 = vld [vmem:[%s240 + $0xb4] sm:$0xff]
      %v513 = vld [vmem:[%s240 + $0xbc] sm:$0xff]
      %v514 = vld [vmem:[%s240 + $0xc4] sm:$0xff]
      %v515 = vld [vmem:[%s240 + $0xcc] sm:$0xff]
      %v516 = vld [vmem:[%s240 + $0xd4] sm:$0xff]
      %v517 = vld [vmem:[%s240 + $0xdc] sm:$0xff]
      %v518 = vld [vmem:[%s240 + $0xe4] sm:$0xff]
      %v519 = vld [vmem:[%s240 + $0xec] sm:$0xff]
      %v520 = vld [vmem:[%s240 + $0xf4] sm:$0xff]
      %v521 = vld [vmem:[%s240 + $0xfc] sm:$0xf]
      %v522 = vadd.f32 %v458, %v490
      %v523 = vadd.f32 %v459, %v491
      %v524 = vadd.f32 %v460, %v492
      %v525 = vadd.f32 %v461, %v493
      %v526 = vadd.f32 %v462, %v494
      %v527 = vadd.f32 %v463, %v495
      %v528 = vadd.f32 %v464, %v496
      %v529 = vadd.f32 %v465, %v497
      %v530 = vadd.f32 %v466, %v498
      %v531 = vadd.f32 %v467, %v499
      %v532 = vadd.f32 %v468, %v500
      %v533 = vadd.f32 %v469, %v501
      %v534 = vadd.f32 %v470, %v502
      %v535 = vadd.f32 %v471, %v503
      %v536 = vadd.f32 %v472, %v504
      %v537 = vadd.f32 %v473, %v505
      %v538 = vadd.f32 %v474, %v506
      %v539 = vadd.f32 %v475, %v507
      %v540 = vadd.f32 %v476, %v508
      %v541 = vadd.f32 %v477, %v509
      %v542 = vadd.f32 %v478, %v510
      %v543 = vadd.f32 %v479, %v511
      %v544 = vadd.f32 %v480, %v512
      %v545 = vadd.f32 %v481, %v513
      %v546 = vadd.f32 %v482, %v514
      %v547 = vadd.f32 %v483, %v515
      %v548 = vadd.f32 %v484, %v516
      %v549 = vadd.f32 %v485, %v517
      %v550 = vadd.f32 %v486, %v518
      %v551 = vadd.f32 %v487, %v519
      %v552 = vadd.f32 %v488, %v520
      %v553 = vadd.f32 %v489, %v521
      %v554 = vmul.f32 %v522, 0.2
      %v555 = vmul.f32 %v523, 0.2
      %v556 = vmul.f32 %v524, 0.2
      %v557 = vmul.f32 %v525, 0.2
      %v558 = vmul.f32 %v526, 0.2
      %v559 = vmul.f32 %v527, 0.2
      %v560 = vmul.f32 %v528, 0.2
      %v561 = vmul.f32 %v529, 0.2
      %v562 = vmul.f32 %v530, 0.2
      %v563 = vmul.f32 %v531, 0.2
      %v564 = vmul.f32 %v532, 0.2
      %v565 = vmul.f32 %v533, 0.2
      %v566 = vmul.f32 %v534, 0.2
      %v567 = vmul.f32 %v535, 0.2
      %v568 = vmul.f32 %v536, 0.2
      %v569 = vmul.f32 %v537, 0.2
      %v570 = vmul.f32 %v538, 0.2
      %v571 = vmul.f32 %v539, 0.2
      %v572 = vmul.f32 %v540, 0.2
      %v573 = vmul.f32 %v541, 0.2
      %v574 = vmul.f32 %v542, 0.2
      %v575 = vmul.f32 %v543, 0.2
      %v576 = vmul.f32 %v544, 0.2
      %v577 = vmul.f32 %v545, 0.2
      %v578 = vmul.f32 %v546, 0.2
      %v579 = vmul.f32 %v547, 0.2
      %v580 = vmul.f32 %v548, 0.2
      %v581 = vmul.f32 %v549, 0.2
      %v582 = vmul.f32 %v550, 0.2
      %v583 = vmul.f32 %v551, 0.2
      %v584 = vmul.f32 %v552, 0.2
      %v585 = vmul.f32 %v553, 0.2
      %vm586 = vcmask 31744
      %587 = vst.msk [vmem:[%s264 + $0x2] sm:$0xff] %vm586, %v554
      %588 = vst.msk [vmem:[%s264 + $0xa] sm:$0xff] %vm586, %v555
      %589 = vst.msk [vmem:[%s264 + $0x12] sm:$0xff] %vm586, %v556
      %590 = vst.msk [vmem:[%s264 + $0x1a] sm:$0xff] %vm586, %v557
      %591 = vst.msk [vmem:[%s264 + $0x22] sm:$0xff] %vm586, %v558
      %592 = vst.msk [vmem:[%s264 + $0x2a] sm:$0xff] %vm586, %v559
      %593 = vst.msk [vmem:[%s264 + $0x32] sm:$0xff] %vm586, %v560
      %594 = vst.msk [vmem:[%s264 + $0x3a] sm:$0xff] %vm586, %v561
      %595 = vst.msk [vmem:[%s264 + $0x42] sm:$0xff] %vm586, %v562
      %596 = vst.msk [vmem:[%s264 + $0x4a] sm:$0xff] %vm586, %v563
      %597 = vst.msk [vmem:[%s264 + $0x52] sm:$0xff] %vm586, %v564
      %598 = vst.msk [vmem:[%s264 + $0x5a] sm:$0xff] %vm586, %v565
      %599 = vst.msk [vmem:[%s264 + $0x62] sm:$0xff] %vm586, %v566
      %600 = vst.msk [vmem:[%s264 + $0x6a] sm:$0xff] %vm586, %v567
      %601 = vst.msk [vmem:[%s264 + $0x72] sm:$0xff] %vm586, %v568
      %602 = vst.msk [vmem:[%s264 + $0x7a] sm:$0xff] %vm586, %v569
      %603 = vst.msk [vmem:[%s264 + $0x82] sm:$0xff] %vm586, %v570
      %604 = vst.msk [vmem:[%s264 + $0x8a] sm:$0xff] %vm586, %v571
      %605 = vst.msk [vmem:[%s264 + $0x92] sm:$0xff] %vm586, %v572
      %606 = vst.msk [vmem:[%s264 + $0x9a] sm:$0xff] %vm586, %v573
      %607 = vst.msk [vmem:[%s264 + $0xa2] sm:$0xff] %vm586, %v574
      %608 = vst.msk [vmem:[%s264 + $0xaa] sm:$0xff] %vm586, %v575
      %609 = vst.msk [vmem:[%s264 + $0xb2] sm:$0xff] %vm586, %v576
      %610 = vst.msk [vmem:[%s264 + $0xba] sm:$0xff] %vm586, %v577
      %611 = vst.msk [vmem:[%s264 + $0xc2] sm:$0xff] %vm586, %v578
      %612 = vst.msk [vmem:[%s264 + $0xca] sm:$0xff] %vm586, %v579
      %613 = vst.msk [vmem:[%s264 + $0xd2] sm:$0xff] %vm586, %v580
      %614 = vst.msk [vmem:[%s264 + $0xda] sm:$0xff] %vm586, %v581
      %615 = vst.msk [vmem:[%s264 + $0xe2] sm:$0xff] %vm586, %v582
      %616 = vst.msk [vmem:[%s264 + $0xea] sm:$0xff] %vm586, %v583
      %617 = vst.msk [vmem:[%s264 + $0xf2] sm:$0xff] %vm586, %v584
      %vm618 = vcmask 27648
      %619 = vst.msk [vmem:[%s264 + $0xfa] sm:$0xf] %vm618, %v585
      %v620 = vld [vmem:[%s248] sm:$0x3]
      %vm621 = vcmask 25600
      %622 = vst.msk [vmem:[#allocation2] sm:$0x3] %vm621, %v620
      %v623 = vld [vmem:[%s240] sm:$0xf]
      %624 = vst.msk [vmem:[#allocation2 + $0x2] sm:$0xf] %vm618, %v623
      %v625 = vld [vmem:[#allocation2] sm:$0x3]
      %v626 = vld [vmem:[#allocation2 + $0x1] sm:$0x3]
      %v627 = vadd.f32 %v625, %v626
      %v628 = vld [vmem:[#allocation2 + $0x2] sm:$0x3]
      %v629 = vadd.f32 %v627, %v628
      %v630 = vld [vmem:[#allocation2 + $0x3] sm:$0x3]
      %v631 = vadd.f32 %v629, %v630
      %v632 = vld [vmem:[#allocation2 + $0x4] sm:$0x3]
      %v633 = vadd.f32 %v631, %v632
      %v634 = vmul.f32 %v633, 0.2
      %635 = vst.msk [vmem:[%s264] sm:$0x3] %vm621, %v634
      %v636 = vld [vmem:[%s240 + $0xfc] sm:$0xf]
      %637 = vst.msk [vmem:[#allocation3] sm:$0xf] %vm618, %v636
      %v638 = vld [vmem:[%s255] sm:$0x3]
      %639 = vst.msk [vmem:[#allocation3 + $0x4] sm:$0x3] %vm621, %v638
      %v640 = vld [vmem:[#allocation3] sm:$0x3]
      %v641 = vld [vmem:[#allocation3 + $0x1] sm:$0x3]
      %v642 = vadd.f32 %v640, %v641
      %v643 = vld [vmem:[#allocation3 + $0x2] sm:$0x3]
      %v644 = vadd.f32 %v642, %v643
      %v645 = vld [vmem:[#allocation3 + $0x3] sm:$0x3]
      %v646 = vadd.f32 %v644, %v645
      %v647 = vld [vmem:[#allocation3 + $0x4] sm:$0x3]
      %v648 = vadd.f32 %v646, %v647
      %v649 = vmul.f32 %v648, 0.2
      %650 = vst.msk [vmem:[%s264 + $0xfe] sm:$0x3] %vm621, %v649
      %s651 = smul.u32 32, %s19
      %p652 = scmp.lt.s32.totalorder %s18, 1
      %s653 = scalar_select %p652, %s18, 1
      %p654 = scmp.lt.s32.totalorder %s651, 31
      %s655 = scalar_select %p654, %s651, 31
      %s656 = smul.addr %s653, 32
      %s657 = sadd.s32 %s655, %s656
      %s658 = smul.addr %s657, 8
      %s659 = scalar_lea.vmem %s3, %s658
      // Predicated region
      $region33: #{tpu_custom_call.1} parent=31 // pred_check
        %p660 = pneg %p130
      $region34: #{tpu_custom_call.1} parent=31 // pred_check_branch
        %662 = sbr.rel (%p660) target = $region36
      $region35: #{tpu_custom_call.1} parent=31 // pred_region
        %s663 = smul.u32 32, %s19
      $region36: #{tpu_custom_call.1} parent=31 // pred_fallthru
        _
    $region32: #{tpu_custom_call.1} parent=5 // pred_fallthru
      _
    %p664 = scmp.le.s32.totalorder 2, %s9
    // Predicated region
    $region37: #{tpu_custom_call.1} parent=5 // pred_check
      %p665 = pneg %p664
    $region38: #{tpu_custom_call.1} parent=5 // pred_check_branch
      %667 = sbr.rel (%p665) target = $region40
    $region39: #{tpu_custom_call.1} parent=5 // pred_region
      %s668 = ssub.s32 %s9, 2
      // Predicated region
      $region41: #{tpu_custom_call.1} parent=39 // pred_check
        %p669 = pneg %p136
      $region42: #{tpu_custom_call.1} parent=39 // pred_check_branch
        %671 = sbr.rel (%p669) target = $region44
      $region43: #{tpu_custom_call.1} parent=39 // pred_region
        %s672 = smul.u32 32, %s21
        %p673 = scmp.lt.s32.totalorder %s20, 1
        %s674 = scalar_select %p673, %s20, 1
        %p675 = scmp.lt.s32.totalorder %s672, 31
        %s676 = scalar_select %p675, %s672, 31
        %s677 = smul.addr %s674, 32
        %s678 = sadd.s32 %s676, %s677
        %s679 = smul.addr %s678, 8
        %s680 = scalar_lea.vmem %s3, %s679
      $region44: #{tpu_custom_call.1} parent=39 // pred_fallthru
        _
    $region40: #{tpu_custom_call.1} parent=5 // pred_fallthru
      _
  $region6: #{tpu_custom_call.1} parent=0 // loop_footer
    %s13 = sadd.s32 1, %s9
  $region7: #{tpu_custom_call.1} parent=0 // loop_footer_branch
    %8 = sbr.rel target = $region3
  $region8: #{tpu_custom_call.1} parent=0 // loop_exit
    _

</llo_original>
